<compile_context>
chip_gen: v7x
topology: tpu7x:2x2x1
jax: 0.10.0
libtpu: 0.0.40
codegen_flags: <defaults>
</compile_context>

<pallas_src>
import functools
from typing import NamedTuple

import jax
import jax.numpy as jnp
from jax import lax
from jax.experimental import pallas as pl
from jax.experimental.pallas import tpu as pltpu

LOG_STD_MAX = 2.0
LOG_STD_MIN = -20.0

# Fused (mean | log_std) head output is zero-padded to this many lanes so the
# output store is lane-dense (unmasked vst); real columns are sliced out in
# the wrapper (or kept packed with return_packed=True).
HEAD_LANES = 128


def _round_up(x, m):
    return (x + m - 1) // m * m


class PreparedParams(NamedTuple):
    """Padded / fused / pre-cast weights, built once per parameter update."""
    w1: jax.Array   # [num_inputs, Hp]  bf16
    b1: jax.Array   # [1, Hp]           f32
    w2: jax.Array   # [Hp, Hp]          bf16
    b2: jax.Array   # [1, Hp]           f32
    wh: jax.Array   # [Hp, HEAD_LANES]  bf16  (cols [0,A)=mean, [A,2A)=log_std)
    bh: jax.Array   # [1, HEAD_LANES]   f32
    num_actions: int


def prepare_params(params, head_lanes=HEAD_LANES):
    """Hoisted weight prep: pad hidden to 128 lanes, fuse heads, cast to bf16.

    Call once per optimizer step (or once for inference), NOT per forward.
    Zero padding keeps the math exact: padded hidden columns compute
    relu(0 + 0) = 0 and contribute nothing downstream.
    """
    w1, b1, w2, b2, wm, bm, ws, bs = params
    num_inputs, H = w1.shape
    A = wm.shape[1]
    assert 2 * A <= head_lanes, "num_actions too large for the padded head width"
    Hp = _round_up(H, 128)

    w1_p = jnp.zeros((num_inputs, Hp), jnp.bfloat16).at[:, :H].set(w1.astype(jnp.bfloat16))
    b1_p = jnp.zeros((1, Hp), jnp.float32).at[:, :H].set(b1)
    w2_p = jnp.zeros((Hp, Hp), jnp.bfloat16).at[:H, :H].set(w2.astype(jnp.bfloat16))
    b2_p = jnp.zeros((1, Hp), jnp.float32).at[:, :H].set(b2)

    wh_p = jnp.zeros((Hp, head_lanes), jnp.bfloat16)
    wh_p = wh_p.at[:H, :A].set(wm.astype(jnp.bfloat16))
    wh_p = wh_p.at[:H, A:2 * A].set(ws.astype(jnp.bfloat16))
    bh_p = jnp.zeros((1, head_lanes), jnp.float32)
    bh_p = bh_p.at[:, :A].set(bm)
    bh_p = bh_p.at[:, A:2 * A].set(bs)

    return PreparedParams(w1_p, b1_p, w2_p, b2_p, wh_p, bh_p, A)


def _policy_kernel(num_actions, x_ref, w1_ref, b1_ref, w2_ref, b2_ref,
                   wh_ref, bh_ref, out_ref):
    x = x_ref[...]                                               # bf16 [TB, In]
    # linear1 + relu (MXU, f32 accumulate; re-cast bf16 for the next matmul).
    # Hidden dim is padded to 128 lanes -> every intermediate vreg is dense.
    h1 = jnp.dot(x, w1_ref[...], preferred_element_type=jnp.float32) + b1_ref[...]
    h1 = jnp.maximum(h1, 0.0).astype(jnp.bfloat16)
    # linear2 + relu
    h2 = jnp.dot(h1, w2_ref[...], preferred_element_type=jnp.float32) + b2_ref[...]
    h2 = jnp.maximum(h2, 0.0).astype(jnp.bfloat16)
    # fused mean|log_std head: one MXU push, one lane-dense store
    y = jnp.dot(h2, wh_ref[...], preferred_element_type=jnp.float32) + bh_ref[...]
    # clamp only the log_std lanes (columns >= num_actions); mean lanes pass through
    col = lax.broadcasted_iota(jnp.int32, y.shape, 1)
    y = jnp.where(col >= num_actions, jnp.clip(y, LOG_STD_MIN, LOG_STD_MAX), y)
    out_ref[...] = y.astype(out_ref.dtype)                      # bf16 store


def _full_spec(shape):
    # Full-extent, constant-index block (works with or without a grid).
    return pl.BlockSpec(shape, lambda *_: (0,) * len(shape))


def gaussian_policy_forward(state, prepared: PreparedParams, *,
                            block_batch=4096, small_batch_max=240,
                            return_packed=False):
    """state: [B, num_inputs] float32.

    Returns (mean, log_std), each [B, A] float32 — or, with
    return_packed=True, the packed bf16 [B, HEAD_LANES] buffer
    (cols [0,A)=mean, [A,2A)=log_std) to avoid the epilogue slice passes.
    """
    w1, b1, w2, b2, wh, bh, A = prepared
    B, num_inputs = state.shape
    assert num_inputs == w1.shape[0]

    x_bf = state.astype(jnp.bfloat16)
    kernel = functools.partial(_policy_kernel, A)
    weight_args = (w1, b1, w2, b2, wh, bh)
    weight_specs = [_full_spec(w.shape) for w in weight_args]

    if B <= small_batch_max:
        # Tiny (acting / inference) batch: no grid at all — one full-extent
        # VMEM block, no per-step grid overhead.
        out = pl.pallas_call(
            kernel,
            out_shape=jax.ShapeDtypeStruct((B, HEAD_LANES), jnp.bfloat16),
            in_specs=[_full_spec(x_bf.shape)] + weight_specs,
            out_specs=_full_spec((B, HEAD_LANES)),
        )(x_bf, *weight_args)
    else:
        # Training-sized batch: tile the batch into >=2 blocks (so v7x's two
        # TensorCores both get work via the "parallel" axis; on 1-TC chips
        # the extra grid step is ~0.35us and harmless), keep weights resident
        # (constant index maps), stream activation/output tiles.
        TB = min(block_batch, max(128, _round_up(pl.cdiv(B, 2), 8)))
        num_blocks = pl.cdiv(B, TB)
        Bp = num_blocks * TB
        if Bp != B:
            x_bf = jnp.pad(x_bf, ((0, Bp - B), (0, 0)))
        out = pl.pallas_call(
            kernel,
            out_shape=jax.ShapeDtypeStruct((Bp, HEAD_LANES), jnp.bfloat16),
            grid=(num_blocks,),
            in_specs=[pl.BlockSpec((TB, num_inputs), lambda i: (i, 0))] + weight_specs,
            out_specs=pl.BlockSpec((TB, HEAD_LANES), lambda i: (i, 0)),
            compiler_params=pltpu.CompilerParams(
                dimension_semantics=("parallel",),
                vmem_limit_bytes=32 * 1024 * 1024),
        )(x_bf, *weight_args)
        out = out[:B]

    if return_packed:
        # Consumers (e.g. a fused sampling kernel) should respect the A / 2A
        # column boundaries; columns >= 2A are zero padding.
        return out

    mean = out[:, :A].astype(jnp.float32)
    log_std = out[:, A:2 * A].astype(jnp.float32)
    return mean, log_std


def init_params(key, num_inputs, num_actions, hidden_size, init_w=0.003):
    """Synthetic init mirroring the PyTorch module's shapes.

    linear1/linear2: PyTorch default uniform(-1/sqrt(fan_in), 1/sqrt(fan_in)).
    mean/log_std heads: uniform(-init_w, init_w).
    Weights stored as [in, out]; biases as [1, out].
    """
    ks = jax.random.split(key, 8)
    lim1 = 1.0 / jnp.sqrt(num_inputs)
    lim2 = 1.0 / jnp.sqrt(hidden_size)
    w1 = jax.random.uniform(ks[0], (num_inputs, hidden_size), jnp.float32, -lim1, lim1)
    b1 = jax.random.uniform(ks[1], (1, hidden_size), jnp.float32, -lim1, lim1)
    w2 = jax.random.uniform(ks[2], (hidden_size, hidden_size), jnp.float32, -lim2, lim2)
    b2 = jax.random.uniform(ks[3], (1, hidden_size), jnp.float32, -lim2, lim2)
    wm = jax.random.uniform(ks[4], (hidden_size, num_actions), jnp.float32, -init_w, init_w)
    bm = jax.random.uniform(ks[5], (1, num_actions), jnp.float32, -init_w, init_w)
    ws = jax.random.uniform(ks[6], (hidden_size, num_actions), jnp.float32, -init_w, init_w)
    bs = jax.random.uniform(ks[7], (1, num_actions), jnp.float32, -init_w, init_w)
    return (w1, b1, w2, b2, wm, bm, ws, bs)


def reference_forward(state, params):
    """Pure-JAX reference mirroring the kernel's bf16-operand / f32-accumulate
    math and the bf16 output store."""
    w1, b1, w2, b2, wm, bm, ws, bs = params
    f32, bf16 = jnp.float32, jnp.bfloat16
    x = state.astype(bf16)
    h1 = jnp.maximum(jnp.dot(x, w1.astype(bf16),
                             preferred_element_type=f32) + b1, 0.0).astype(bf16)
    h2 = jnp.maximum(jnp.dot(h1, w2.astype(bf16),
                             preferred_element_type=f32) + b2, 0.0).astype(bf16)
    mean = (jnp.dot(h2, wm.astype(bf16), preferred_element_type=f32) + bm)
    log_std = jnp.clip(jnp.dot(h2, ws.astype(bf16), preferred_element_type=f32) + bs,
                       LOG_STD_MIN, LOG_STD_MAX)
    return mean.astype(bf16).astype(f32), log_std.astype(bf16).astype(f32)


if __name__ == "__main__":
    # Small shapes consistent with the module: state vector in, action vector out.
    batch = 8
    num_inputs = 16
    num_actions = 4
    hidden_size = 32

    key = jax.random.PRNGKey(0)
    k_state, k_params, k_big = jax.random.split(key, 3)

    state = jax.random.normal(k_state, (batch, num_inputs), jnp.float32)
    params = init_params(k_params, num_inputs, num_actions, hidden_size)
    prepared = prepare_params(params)          # hoisted: once per param update

    # --- small-batch (no-grid) path ---
    mean, log_std = gaussian_policy_forward(state, prepared)
    jax.block_until_ready((mean, log_std))

    ref_mean, ref_log_std = reference_forward(state, params)
    assert mean.shape == (batch, num_actions)
    assert log_std.shape == (batch, num_actions)
    assert jnp.allclose(mean, ref_mean, atol=2e-2, rtol=2e-2)
    assert jnp.allclose(log_std, ref_log_std, atol=2e-2, rtol=2e-2)
    assert bool(jnp.all(log_std <= LOG_STD_MAX)) and bool(jnp.all(log_std >= LOG_STD_MIN))

    # --- batch-tiled ("parallel" grid, >=2 blocks) path, ragged last tile ---
    big_batch = 1000
    big_state = jax.random.normal(k_big, (big_batch, num_inputs), jnp.float32)
    mean_b, log_std_b = gaussian_policy_forward(big_state, prepared)
    jax.block_until_ready((mean_b, log_std_b))
    ref_mean_b, ref_log_std_b = reference_forward(big_state, params)
    assert mean_b.shape == (big_batch, num_actions)
    assert jnp.allclose(mean_b, ref_mean_b, atol=2e-2, rtol=2e-2)
    assert jnp.allclose(log_std_b, ref_log_std_b, atol=2e-2, rtol=2e-2)

    # --- packed output path (skips the epilogue slice HBM passes) ---
    packed = gaussian_policy_forward(big_state, prepared, return_packed=True)
    jax.block_until_ready(packed)
    assert packed.shape == (big_batch, HEAD_LANES) and packed.dtype == jnp.bfloat16
    assert jnp.allclose(packed[:, :num_actions].astype(jnp.float32),
                        ref_mean_b, atol=2e-2, rtol=2e-2)

    # TODO(synk): `evaluate()` (rsample/tanh/log_prob, pltpu.prng_* sampling)
    # and twin Q-heads would be the next fusion target; only the deterministic
    # forward() hot path is implemented in this kernel.
    print("KERNEL_OK")
</pallas_src>

<mosaic_0001>
module attributes {stable_mosaic.version = 11 : i64} {
  func.func @_policy_kernel(%arg0: memref<8x16xbf16, #tpu.memory_space<vmem>>, %arg1: memref<16x128xbf16, #tpu.memory_space<vmem>>, %arg2: memref<1x128xf32, #tpu.memory_space<vmem>>, %arg3: memref<128x128xbf16, #tpu.memory_space<vmem>>, %arg4: memref<1x128xf32, #tpu.memory_space<vmem>>, %arg5: memref<128x128xbf16, #tpu.memory_space<vmem>>, %arg6: memref<1x128xf32, #tpu.memory_space<vmem>>, %arg7: memref<8x128xbf16, #tpu.memory_space<vmem>>) attributes {dimension_semantics = [], scalar_prefetch = 0 : i64, scratch_operands = 0 : i64, tpu.core_type = #tpu.core_type<tc>} {
    %c0 = arith.constant 0 : index
    %c0_0 = arith.constant 0 : index
    %0 = vector.load %arg0[%c0, %c0_0] : memref<8x16xbf16, #tpu.memory_space<vmem>>, vector<8x16xbf16>
    %c0_1 = arith.constant 0 : index
    %c0_2 = arith.constant 0 : index
    %1 = vector.load %arg1[%c0_1, %c0_2] : memref<16x128xbf16, #tpu.memory_space<vmem>>, vector<16x128xbf16>
    %cst = arith.constant dense<0.000000e+00> : vector<8x128xf32>
    %2 = tpu.matmul %0, %1, %cst {dimension_numbers = #tpu.dot_dimension_numbers<[1], [0], [0], [1], [0, 0, 1, 1], [], []>} : vector<8x16xbf16>, vector<16x128xbf16>, vector<8x128xf32> -> vector<8x128xf32>
    %c0_3 = arith.constant 0 : index
    %c0_4 = arith.constant 0 : index
    %3 = vector.load %arg2[%c0_3, %c0_4] : memref<1x128xf32, #tpu.memory_space<vmem>>, vector<1x128xf32>
    %4 = vector.broadcast %3 : vector<1x128xf32> to vector<8x128xf32>
    %5 = arith.addf %2, %4 : vector<8x128xf32>
    %cst_5 = arith.constant 0.000000e+00 : f32
    %6 = vector.broadcast %cst_5 : f32 to vector<8x128xf32>
    %7 = arith.maximumf %5, %6 : vector<8x128xf32>
    %8 = arith.truncf %7 : vector<8x128xf32> to vector<8x128xbf16>
    %c0_6 = arith.constant 0 : index
    %c0_7 = arith.constant 0 : index
    %9 = vector.load %arg3[%c0_6, %c0_7] : memref<128x128xbf16, #tpu.memory_space<vmem>>, vector<128x128xbf16>
    %cst_8 = arith.constant dense<0.000000e+00> : vector<8x128xf32>
    %10 = tpu.matmul %8, %9, %cst_8 {dimension_numbers = #tpu.dot_dimension_numbers<[1], [0], [0], [1], [0, 0, 1, 1], [], []>} : vector<8x128xbf16>, vector<128x128xbf16>, vector<8x128xf32> -> vector<8x128xf32>
    %c0_9 = arith.constant 0 : index
    %c0_10 = arith.constant 0 : index
    %11 = vector.load %arg4[%c0_9, %c0_10] : memref<1x128xf32, #tpu.memory_space<vmem>>, vector<1x128xf32>
    %12 = vector.broadcast %11 : vector<1x128xf32> to vector<8x128xf32>
    %13 = arith.addf %10, %12 : vector<8x128xf32>
    %cst_11 = arith.constant 0.000000e+00 : f32
    %14 = vector.broadcast %cst_11 : f32 to vector<8x128xf32>
    %15 = arith.maximumf %13, %14 : vector<8x128xf32>
    %16 = arith.truncf %15 : vector<8x128xf32> to vector<8x128xbf16>
    %c0_12 = arith.constant 0 : index
    %c0_13 = arith.constant 0 : index
    %17 = vector.load %arg5[%c0_12, %c0_13] : memref<128x128xbf16, #tpu.memory_space<vmem>>, vector<128x128xbf16>
    %cst_14 = arith.constant dense<0.000000e+00> : vector<8x128xf32>
    %18 = tpu.matmul %16, %17, %cst_14 {dimension_numbers = #tpu.dot_dimension_numbers<[1], [0], [0], [1], [0, 0, 1, 1], [], []>} : vector<8x128xbf16>, vector<128x128xbf16>, vector<8x128xf32> -> vector<8x128xf32>
    %c0_15 = arith.constant 0 : index
    %c0_16 = arith.constant 0 : index
    %19 = vector.load %arg6[%c0_15, %c0_16] : memref<1x128xf32, #tpu.memory_space<vmem>>, vector<1x128xf32>
    %20 = vector.broadcast %19 : vector<1x128xf32> to vector<8x128xf32>
    %21 = arith.addf %18, %20 : vector<8x128xf32>
    %22 = tpu.iota {dimensions = array<i32: 1>} : vector<8x128xi32>
    %c4_i32 = arith.constant 4 : i32
    %23 = vector.broadcast %c4_i32 : i32 to vector<8x128xi32>
    %24 = arith.cmpi sge, %22, %23 : vector<8x128xi32>
    %cst_17 = arith.constant -2.000000e+01 : f32
    %cst_18 = arith.constant 2.000000e+00 : f32
    %25 = vector.broadcast %cst_17 : f32 to vector<8x128xf32>
    %26 = arith.maximumf %25, %21 : vector<8x128xf32>
    %27 = vector.broadcast %cst_18 : f32 to vector<8x128xf32>
    %28 = arith.minimumf %27, %26 : vector<8x128xf32>
    %29 = arith.select %24, %28, %21 : vector<8x128xi1>, vector<8x128xf32>
    %30 = arith.truncf %29 : vector<8x128xf32> to vector<8x128xbf16>
    %c0_19 = arith.constant 0 : index
    %c0_20 = arith.constant 0 : index
    %31 = vector.load %arg7[%c0_19, %c0_20] : memref<8x128xbf16, #tpu.memory_space<vmem>>, vector<8x128xbf16>
    tpu.vector_store %arg7[%c0_19, %c0_20], %30 {strides = array<i32>} : memref<8x128xbf16, #tpu.memory_space<vmem>>, vector<8x128xbf16>,
    return
  }
}

</mosaic_0001>

<llo_original>
// kernel: tpu_custom_call.1
$region0: #{tpu_custom_call.1}
  #allocation0 [shape = 'u32[]', space=smem, size = 0x4, offset = 0x4, fixed_abs, tag = 'smem constant byte address 0x4 - core index']
  #allocation1 [shape = 'u32[144,128]{1,0:T(1,128)}', space=vmem, size = 0x12000, scoped, tag = 'internal scratch']
  %s0 = inlined_call_operand.hbm [shape: bf16[8,16], index: 0, kind: input, shape index: {}]
  %s1 = inlined_call_operand.hbm [shape: bf16[16,128], index: 1, kind: input, shape index: {}]
  %s2 = inlined_call_operand.vmem [shape: f32[1,128], index: 2, kind: input, shape index: {}]
  %s3 = inlined_call_operand.hbm [shape: bf16[128,128], index: 3, kind: input, shape index: {}]
  %s4 = inlined_call_operand.vmem [shape: f32[1,128], index: 4, kind: input, shape index: {}]
  %s5 = inlined_call_operand.hbm [shape: bf16[128,128], index: 5, kind: input, shape index: {}]
  %s6 = inlined_call_operand.vmem [shape: f32[1,128], index: 6, kind: input, shape index: {}]
  %s7 = inlined_call_operand.hbm [shape: bf16[8,128], index: 7, kind: output, shape index: {}]
  %s8 = sld [smem:[#allocation0]]
  $region54: #{tpu_custom_call.1} parent=0
    _
  %s10 = ssub.s32 1, %s8
  %s11 = scalar_select 0, %s10, %s8
  $region1: #{tpu_custom_call.1} parent=0
    #allocation2 [shape = 'u8[2048]{0}', space=vmem, size = 0x800, scoped, tag = 'input window, operand 0, single buffered']
    #allocation3 [shape = 's32[1]{0}', space=sflag, size = 0x4, scoped, tag = 'scoped memory for tpu_custom_call.1']
    #allocation4 [shape = 's32[1]{0}', space=sflag, size = 0x4, scoped, tag = 'scoped memory for tpu_custom_call.1']
    #allocation5 [shape = 'u8[4096]{0}', space=vmem, size = 0x1000, scoped, tag = 'input window, operand 1, single buffered']
    #allocation6 [shape = 's32[1]{0}', space=sflag, size = 0x4, scoped, tag = 'scoped memory for tpu_custom_call.1']
    #allocation7 [shape = 'u8[32768]{0}', space=vmem, size = 0x8000, scoped, tag = 'input window, operand 3, single buffered']
    #allocation8 [shape = 'u8[32768]{0}', space=vmem, size = 0x8000, scoped, tag = 'input window, operand 5, single buffered']
    #allocation9 [shape = 's32[1]{0}', space=sflag, size = 0x4, scoped, tag = 'scoped memory for tpu_custom_call.1']
    #allocation10 [shape = 'u8[2048]{0}', space=vmem, size = 0x800, scoped, tag = 'output window, operand 0, single buffered']
    %12 = vsyncpa [#allocation3], 0
    %13 = vsyncpa [#allocation6], 0
    %14 = vsyncpa [#allocation9], 0
    %15 = vsyncpa [#allocation4], 0
    // Predicated region
    $region2: #{tpu_custom_call.1} parent=1 // pred_check
      _
    $region3: #{tpu_custom_call.1} parent=1 // pred_check_branch
      %17 = sbr.rel (0) target = $region5
    $region4: #{tpu_custom_call.1} parent=1 // pred_region
      %s19 = ssub.s32 64, 64
      %20 = vsyncadd [#allocation3], %s19
      %s22 = sshll.u32 [#allocation2], 4
      %s23 = int_to_ptr.vmem [resolvable:$true] %s22
      %25 = dma.hbm_to_vmem [thread:$0]  %s0, 64, %s23, [#allocation3]
    $region5: #{tpu_custom_call.1} parent=1 // pred_fallthru
      _
    // Predicated region
    $region6: #{tpu_custom_call.1} parent=1 // pred_check
      _
    $region7: #{tpu_custom_call.1} parent=1 // pred_check_branch
      %27 = sbr.rel (0) target = $region9
    $region8: #{tpu_custom_call.1} parent=1 // pred_region
      %s29 = ssub.s32 128, 128
      %30 = vsyncadd [#allocation6], %s29
      %s31 = sshll.u32 [#allocation5], 4
      %s32 = int_to_ptr.vmem [resolvable:$true] %s31
      %37 = dma.hbm_to_vmem [thread:$0]  %s1, 128, %s32, [#allocation6], 64, 64, 4
    $region9: #{tpu_custom_call.1} parent=1 // pred_fallthru
      _
    // Predicated region
    $region10: #{tpu_custom_call.1} parent=1 // pred_check
      _
    $region11: #{tpu_custom_call.1} parent=1 // pred_check_branch
      %39 = sbr.rel (0) target = $region13
    $region12: #{tpu_custom_call.1} parent=1 // pred_region
      _
    $region13: #{tpu_custom_call.1} parent=1 // pred_fallthru
      _
    // Predicated region
    $region14: #{tpu_custom_call.1} parent=1 // pred_check
      _
    $region15: #{tpu_custom_call.1} parent=1 // pred_check_branch
      %41 = sbr.rel (0) target = $region17
    $region16: #{tpu_custom_call.1} parent=1 // pred_region
      %s43 = ssub.s32 1024, 1024
      %44 = vsyncadd [#allocation6], %s43
      %s45 = sshll.u32 [#allocation7], 4
      %s46 = int_to_ptr.vmem [resolvable:$true] %s45
      %51 = dma.hbm_to_vmem [thread:$0]  %s3, 1024, %s46, [#allocation6], 64, 64, 4
    $region17: #{tpu_custom_call.1} parent=1 // pred_fallthru
      _
    // Predicated region
    $region18: #{tpu_custom_call.1} parent=1 // pred_check
      _
    $region19: #{tpu_custom_call.1} parent=1 // pred_check_branch
      %53 = sbr.rel (0) target = $region21
    $region20: #{tpu_custom_call.1} parent=1 // pred_region
      _
    $region21: #{tpu_custom_call.1} parent=1 // pred_fallthru
      _
    // Predicated region
    $region22: #{tpu_custom_call.1} parent=1 // pred_check
      _
    $region23: #{tpu_custom_call.1} parent=1 // pred_check_branch
      %55 = sbr.rel (0) target = $region25
    $region24: #{tpu_custom_call.1} parent=1 // pred_region
      %s57 = ssub.s32 1024, 1024
      %58 = vsyncadd [#allocation9], %s57
      %s59 = sshll.u32 [#allocation8], 4
      %s60 = int_to_ptr.vmem [resolvable:$true] %s59
      %65 = dma.hbm_to_vmem [thread:$0]  %s5, 1024, %s60, [#allocation9], 64, 64, 4
    $region25: #{tpu_custom_call.1} parent=1 // pred_fallthru
      _
    // Predicated region
    $region26: #{tpu_custom_call.1} parent=1 // pred_check
      _
    $region27: #{tpu_custom_call.1} parent=1 // pred_check_branch
      %67 = sbr.rel (0) target = $region29
    $region28: #{tpu_custom_call.1} parent=1 // pred_region
      _
    $region29: #{tpu_custom_call.1} parent=1 // pred_fallthru
      _
    // Predicated region
    $region30: #{tpu_custom_call.1} parent=1 // pred_check
      _
    $region31: #{tpu_custom_call.1} parent=1 // pred_check_branch
      %69 = sbr.rel (0) target = $region33
    $region32: #{tpu_custom_call.1} parent=1 // pred_region
      %70 = dma.done [#allocation3], 64
    $region33: #{tpu_custom_call.1} parent=1 // pred_fallthru
      _
    // Predicated region
    $region34: #{tpu_custom_call.1} parent=1 // pred_check
      _
    $region35: #{tpu_custom_call.1} parent=1 // pred_check_branch
      %72 = sbr.rel (0) target = $region37
    $region36: #{tpu_custom_call.1} parent=1 // pred_region
      %73 = dma.done [#allocation6], 128
    $region37: #{tpu_custom_call.1} parent=1 // pred_fallthru
      _
    // Predicated region
    $region38: #{tpu_custom_call.1} parent=1 // pred_check
      _
    $region39: #{tpu_custom_call.1} parent=1 // pred_check_branch
      %75 = sbr.rel (0) target = $region41
    $region40: #{tpu_custom_call.1} parent=1 // pred_region
      %76 = dma.done [#allocation6], 1024
    $region41: #{tpu_custom_call.1} parent=1 // pred_fallthru
      _
    // Predicated region
    $region42: #{tpu_custom_call.1} parent=1 // pred_check
      _
    $region43: #{tpu_custom_call.1} parent=1 // pred_check_branch
      %78 = sbr.rel (0) target = $region45
    $region44: #{tpu_custom_call.1} parent=1 // pred_region
      %79 = dma.done [#allocation9], 1024
    $region45: #{tpu_custom_call.1} parent=1 // pred_fallthru
      _
    %v81 = vld [vmem:[#allocation2] sm:$0xf]
    %v82 = vld [vmem:[#allocation5] sm:$0xf]
    %v83 = vld [vmem:[#allocation5 + $0x4] sm:$0xf]
    %v84 = vld [vmem:[%s2] sm:$0x1]
    %v86 = vlaneseq
    %v87 = vshrl.u32 %v86, 7
    %v88 = vsub.s32 0, %v87
    %v89 = vrot.slane %v84, %v88
    %v93 = vunpack.c.l.b16 %v82
    %v94 = vunpack.c.l.b16 %v83
    %v95 = vpack.c.b16 %v94, %v93
    %vm97 = vcmask 130048
    %v99 = vsel %vm97, %v81, 0
    %101 = vmatprep.subr.bf16.mxu0 0
    %102 = vmatpush1.bf16.msra.mxu0 %v95
    %103 = vmatprep.subr.bf16.mxu0 0
    %104 = vmatpush1.bf16.msra.mxu0 0
    %105 = vmatprep.subr.bf16.mxu0 0
    %106 = vmatpush1.bf16.msra.mxu0 0
    %107 = vmatprep.subr.bf16.mxu0 0
    %108 = vmatpush1.bf16.msra.mxu0 0
    %109 = vmatprep.subr.bf16.mxu0 0
    %110 = vmatpush1.bf16.msra.mxu0 0
    %111 = vmatprep.subr.bf16.mxu0 0
    %112 = vmatpush1.bf16.msra.mxu0 0
    %113 = vmatprep.subr.bf16.mxu0 0
    %114 = vmatpush1.bf16.msra.mxu0 0
    %115 = vmatprep.subr.bf16.mxu0 0
    %116 = vmatpush1.bf16.msra.mxu0 0
    %117 = vmatprep.subr.bf16.mxu0 0
    %118 = vmatpush1.bf16.msra.mxu0 0
    %119 = vmatprep.subr.bf16.mxu0 0
    %120 = vmatpush1.bf16.msra.mxu0 0
    %121 = vmatprep.subr.bf16.mxu0 0
    %122 = vmatpush1.bf16.msra.mxu0 0
    %123 = vmatprep.subr.bf16.mxu0 0
    %124 = vmatpush1.bf16.msra.mxu0 0
    %125 = vmatprep.subr.bf16.mxu0 0
    %126 = vmatpush1.bf16.msra.mxu0 0
    %127 = vmatprep.subr.bf16.mxu0 0
    %128 = vmatpush1.bf16.msra.mxu0 0
    %129 = vmatprep.subr.bf16.mxu0 0
    %130 = vmatpush1.bf16.msra.mxu0 0
    %131 = vmatprep.subr.bf16.mxu0 0
    %132 = vmatpush1.bf16.msra.mxu0 0
    %133 = vmatprep.mubr.bf16.mxu0 0
    %134 = vmatmul.mubr.bf16.gmra.mrb[0].mxu0 %v99
    %v135 = vpop.f32.mrb[0].mxu0
    %v136 = vadd.f32 %v89, %v135
    %v137 = vpop.f32.mrb[0].mxu0
    %v138 = vpop.f32.mrb[0].mxu0
    %v139 = vpop.f32.mrb[0].mxu0
    %140 = vdwg.mxu0
    %v141 = vmax.f32 %v136, 0.0
    %v142 = vpack.c.bf16 %v141, %v141
    %v143 = vld [vmem:[#allocation7] sm:$0xf]
    %v144 = vld [vmem:[#allocation7 + $0x4] sm:$0xf]
    %v145 = vld [vmem:[#allocation7 + $0x8] sm:$0xf]
    %v146 = vld [vmem:[#allocation7 + $0xc] sm:$0xf]
    %v147 = vld [vmem:[#allocation7 + $0x10] sm:$0xf]
    %v148 = vld [vmem:[#allocation7 + $0x14] sm:$0xf]
    %v149 = vld [vmem:[#allocation7 + $0x18] sm:$0xf]
    %v150 = vld [vmem:[#allocation7 + $0x1c] sm:$0xf]
    %v151 = vld [vmem:[#allocation7 + $0x20] sm:$0xf]
    %v152 = vld [vmem:[#allocation7 + $0x24] sm:$0xf]
    %v153 = vld [vmem:[#allocation7 + $0x28] sm:$0xf]
    %v154 = vld [vmem:[#allocation7 + $0x2c] sm:$0xf]
    %v155 = vld [vmem:[#allocation7 + $0x30] sm:$0xf]
    %v156 = vld [vmem:[#allocation7 + $0x34] sm:$0xf]
    %v157 = vld [vmem:[#allocation7 + $0x38] sm:$0xf]
    %v158 = vld [vmem:[#allocation7 + $0x3c] sm:$0xf]
    %v159 = vld [vmem:[%s4] sm:$0x1]
    %v161 = vlaneseq
    %v162 = vshrl.u32 %v161, 7
    %v163 = vsub.s32 0, %v162
    %v164 = vrot.slane %v159, %v163
    %v182 = vunpack.c.l.b16 %v143
    %v183 = vunpack.c.l.b16 %v144
    %v184 = vunpack.c.l.b16 %v145
    %v185 = vunpack.c.l.b16 %v146
    %v186 = vunpack.c.l.b16 %v147
    %v187 = vunpack.c.l.b16 %v148
    %v188 = vunpack.c.l.b16 %v149
    %v189 = vunpack.c.l.b16 %v150
    %v190 = vunpack.c.l.b16 %v151
    %v191 = vunpack.c.l.b16 %v152
    %v192 = vunpack.c.l.b16 %v153
    %v193 = vunpack.c.l.b16 %v154
    %v194 = vunpack.c.l.b16 %v155
    %v195 = vunpack.c.l.b16 %v156
    %v196 = vunpack.c.l.b16 %v157
    %v197 = vunpack.c.l.b16 %v158
    %v198 = vpack.c.b16 %v183, %v182
    %v199 = vpack.c.b16 %v185, %v184
    %v200 = vpack.c.b16 %v187, %v186
    %v201 = vpack.c.b16 %v189, %v188
    %v202 = vpack.c.b16 %v191, %v190
    %v203 = vpack.c.b16 %v193, %v192
    %v204 = vpack.c.b16 %v195, %v194
    %v205 = vpack.c.b16 %v197, %v196
    %214 = vmatprep.subr.bf16.mxu0 0
    %215 = vmatpush1.bf16.msra.mxu0 %v198
    %216 = vmatprep.subr.bf16.mxu0 0
    %217 = vmatpush1.bf16.msra.mxu0 %v199
    %218 = vmatprep.subr.bf16.mxu0 0
    %219 = vmatpush1.bf16.msra.mxu0 %v200
    %220 = vmatprep.subr.bf16.mxu0 0
    %221 = vmatpush1.bf16.msra.mxu0 %v201
    %222 = vmatprep.subr.bf16.mxu0 0
    %223 = vmatpush1.bf16.msra.mxu0 %v202
    %224 = vmatprep.subr.bf16.mxu0 0
    %225 = vmatpush1.bf16.msra.mxu0 %v203
    %226 = vmatprep.subr.bf16.mxu0 0
    %227 = vmatpush1.bf16.msra.mxu0 %v204
    %228 = vmatprep.subr.bf16.mxu0 0
    %229 = vmatpush1.bf16.msra.mxu0 %v205
    %230 = vmatprep.subr.bf16.mxu0 0
    %231 = vmatpush1.bf16.msra.mxu0 0
    %232 = vmatprep.subr.bf16.mxu0 0
    %233 = vmatpush1.bf16.msra.mxu0 0
    %234 = vmatprep.subr.bf16.mxu0 0
    %235 = vmatpush1.bf16.msra.mxu0 0
    %236 = vmatprep.subr.bf16.mxu0 0
    %237 = vmatpush1.bf16.msra.mxu0 0
    %238 = vmatprep.subr.bf16.mxu0 0
    %239 = vmatpush1.bf16.msra.mxu0 0
    %240 = vmatprep.subr.bf16.mxu0 0
    %241 = vmatpush1.bf16.msra.mxu0 0
    %242 = vmatprep.subr.bf16.mxu0 0
    %243 = vmatpush1.bf16.msra.mxu0 0
    %244 = vmatprep.subr.bf16.mxu0 0
    %245 = vmatpush1.bf16.msra.mxu0 0
    %246 = vmatprep.mubr.bf16.mxu0 0
    %247 = vmatmul.mubr.bf16.gmra.mrb[0].mxu0 %v142
    %v248 = vpop.f32.mrb[0].mxu0
    %v249 = vadd.f32 %v164, %v248
    %v250 = vpop.f32.mrb[0].mxu0
    %v251 = vpop.f32.mrb[0].mxu0
    %v252 = vpop.f32.mrb[0].mxu0
    %253 = vdwg.mxu0
    %v254 = vmax.f32 %v249, 0.0
    %v255 = vpack.c.bf16 %v254, %v254
    %v256 = vld [vmem:[#allocation8] sm:$0xf]
    %v257 = vld [vmem:[#allocation8 + $0x4] sm:$0xf]
    %v258 = vld [vmem:[#allocation8 + $0x8] sm:$0xf]
    %v259 = vld [vmem:[#allocation8 + $0xc] sm:$0xf]
    %v260 = vld [vmem:[#allocation8 + $0x10] sm:$0xf]
    %v261 = vld [vmem:[#allocation8 + $0x14] sm:$0xf]
    %v262 = vld [vmem:[#allocation8 + $0x18] sm:$0xf]
    %v263 = vld [vmem:[#allocation8 + $0x1c] sm:$0xf]
    %v264 = vld [vmem:[#allocation8 + $0x20] sm:$0xf]
    %v265 = vld [vmem:[#allocation8 + $0x24] sm:$0xf]
    %v266 = vld [vmem:[#allocation8 + $0x28] sm:$0xf]
    %v267 = vld [vmem:[#allocation8 + $0x2c] sm:$0xf]
    %v268 = vld [vmem:[#allocation8 + $0x30] sm:$0xf]
    %v269 = vld [vmem:[#allocation8 + $0x34] sm:$0xf]
    %v270 = vld [vmem:[#allocation8 + $0x38] sm:$0xf]
    %v271 = vld [vmem:[#allocation8 + $0x3c] sm:$0xf]
    %v272 = vld [vmem:[%s6] sm:$0x1]
    %v274 = vlaneseq
    %v275 = vshrl.u32 %v274, 7
    %v276 = vsub.s32 0, %v275
    %v277 = vrot.slane %v272, %v276
    %v295 = vunpack.c.l.b16 %v256
    %v296 = vunpack.c.l.b16 %v257
    %v297 = vunpack.c.l.b16 %v258
    %v298 = vunpack.c.l.b16 %v259
    %v299 = vunpack.c.l.b16 %v260
    %v300 = vunpack.c.l.b16 %v261
    %v301 = vunpack.c.l.b16 %v262
    %v302 = vunpack.c.l.b16 %v263
    %v303 = vunpack.c.l.b16 %v264
    %v304 = vunpack.c.l.b16 %v265
    %v305 = vunpack.c.l.b16 %v266
    %v306 = vunpack.c.l.b16 %v267
    %v307 = vunpack.c.l.b16 %v268
    %v308 = vunpack.c.l.b16 %v269
    %v309 = vunpack.c.l.b16 %v270
    %v310 = vunpack.c.l.b16 %v271
    %v311 = vpack.c.b16 %v296, %v295
    %v312 = vpack.c.b16 %v298, %v297
    %v313 = vpack.c.b16 %v300, %v299
    %v314 = vpack.c.b16 %v302, %v301
    %v315 = vpack.c.b16 %v304, %v303
    %v316 = vpack.c.b16 %v306, %v305
    %v317 = vpack.c.b16 %v308, %v307
    %v318 = vpack.c.b16 %v310, %v309
    %327 = vmatprep.subr.bf16.mxu0 0
    %328 = vmatpush1.bf16.msra.mxu0 %v311
    %329 = vmatprep.subr.bf16.mxu0 0
    %330 = vmatpush1.bf16.msra.mxu0 %v312
    %331 = vmatprep.subr.bf16.mxu0 0
    %332 = vmatpush1.bf16.msra.mxu0 %v313
    %333 = vmatprep.subr.bf16.mxu0 0
    %334 = vmatpush1.bf16.msra.mxu0 %v314
    %335 = vmatprep.subr.bf16.mxu0 0
    %336 = vmatpush1.bf16.msra.mxu0 %v315
    %337 = vmatprep.subr.bf16.mxu0 0
    %338 = vmatpush1.bf16.msra.mxu0 %v316
    %339 = vmatprep.subr.bf16.mxu0 0
    %340 = vmatpush1.bf16.msra.mxu0 %v317
    %341 = vmatprep.subr.bf16.mxu0 0
    %342 = vmatpush1.bf16.msra.mxu0 %v318
    %343 = vmatprep.subr.bf16.mxu0 0
    %344 = vmatpush1.bf16.msra.mxu0 0
    %345 = vmatprep.subr.bf16.mxu0 0
    %346 = vmatpush1.bf16.msra.mxu0 0
    %347 = vmatprep.subr.bf16.mxu0 0
    %348 = vmatpush1.bf16.msra.mxu0 0
    %349 = vmatprep.subr.bf16.mxu0 0
    %350 = vmatpush1.bf16.msra.mxu0 0
    %351 = vmatprep.subr.bf16.mxu0 0
    %352 = vmatpush1.bf16.msra.mxu0 0
    %353 = vmatprep.subr.bf16.mxu0 0
    %354 = vmatpush1.bf16.msra.mxu0 0
    %355 = vmatprep.subr.bf16.mxu0 0
    %356 = vmatpush1.bf16.msra.mxu0 0
    %357 = vmatprep.subr.bf16.mxu0 0
    %358 = vmatpush1.bf16.msra.mxu0 0
    %359 = vmatprep.mubr.bf16.mxu0 0
    %360 = vmatmul.mubr.bf16.gmra.mrb[0].mxu0 %v255
    %v361 = vpop.f32.mrb[0].mxu0
    %v362 = vadd.f32 %v277, %v361
    %v363 = vpop.f32.mrb[0].mxu0
    %v364 = vpop.f32.mrb[0].mxu0
    %v365 = vpop.f32.mrb[0].mxu0
    %366 = vdwg.mxu0
    %v367 = vlaneseq
    %v368 = vand.u32 %v367, 127
    %vm369 = vcmp.ge.s32.totalorder %v368, 4
    %v370 = vmax.f32 %v362, -20.0
    %v371 = vmin.f32 %v370, 2.0
    %v372 = vsel %vm369, %v371, %v362
    %v373 = vpack.c.bf16 %v372, %v372
    %374 = vst [vmem:[#allocation10] sm:$0xf] %v373
    // Predicated region
    $region46: #{tpu_custom_call.1} parent=1 // pred_check
      _
    $region47: #{tpu_custom_call.1} parent=1 // pred_check_branch
      %376 = sbr.rel (0) target = $region49
    $region48: #{tpu_custom_call.1} parent=1 // pred_region
      %s378 = ssub.s32 64, 64
      %379 = vsyncadd [#allocation4], %s378
      %s381 = sshll.u32 [#allocation10], 4
      %s382 = int_to_ptr.vmem [resolvable:$true] %s381
      %384 = dma.vmem_to_hbm [thread:$0]  %s382, 64, %s7, [#allocation4]
    $region49: #{tpu_custom_call.1} parent=1 // pred_fallthru
      _
    // Predicated region
    $region50: #{tpu_custom_call.1} parent=1 // pred_check
      _
    $region51: #{tpu_custom_call.1} parent=1 // pred_check_branch
      %386 = sbr.rel (0) target = $region53
    $region52: #{tpu_custom_call.1} parent=1 // pred_region
      %387 = dma.done [#allocation4], 64
    $region53: #{tpu_custom_call.1} parent=1 // pred_fallthru
      _
    %388 = vsyncpa [#allocation3], 1
    %389 = vsyncpa [#allocation6], 1
    %390 = vsyncpa [#allocation9], 1
    %391 = vsyncpa [#allocation4], 1

</llo_original>
